<compile_context>
chip_gen: v7x
topology: tpu7x:2x2x1
jax: 0.10.0
libtpu: 0.0.40
codegen_flags: <defaults>
</compile_context>

<pallas_src>
import jax
import jax.numpy as jnp
from jax.experimental import pallas as pl
from jax.experimental.pallas import tpu as pltpu

K = 5        # conv kernel size
PAD = 2      # conv padding ("same" for stride 1)
C_OUT = 16   # conv output channels
POOL = 2     # max-pool window / stride


def conv_relu_pool_kernel(x_ref, w_ref, b_ref, o_ref, im_ref, rv_ref):
    """TB images per grid step.

    x_ref  : (TB, H, W)          unpadded input images (single channel)
    w_ref  : (K*W, 2*NCp)        combined im2row/Toeplitz conv weights
                                 (even-w output columns in [:NCp], odd-w in [NCp:])
    b_ref  : (1, NCp)            conv bias, tiled per output column (zero in lane padding)
    o_ref  : (TB, Ho, NCp)       relu+maxpool output, lane index = c*Wo + wo
    im_ref : (TB, H, K*W)        VMEM scratch: im2row LHS
    rv_ref : (TB*H, NCp)         VMEM scratch: width-pooled rows (for the height pool)
    """
    TB, H, W = x_ref.shape
    Ho = H // POOL
    NCp = o_ref.shape[2]          # padded C_OUT*Wo, multiple of 128
    KW = K * W

    # --- im2row construction -------------------------------------------------------
    # Row (b*H + h) of the LHS holds padded rows h .. h+K-1 of image b concatenated
    # along lanes.  Only the small boundary strips (height zero-padding) are
    # zero-written; everything else is a single copy of the input per tap.
    for kh in range(K):
        lo = max(0, PAD - kh)          # first output row whose tap row is in range
        hi = min(H, H + PAD - kh)      # one past the last such output row
        seg = slice(kh * W, (kh + 1) * W)
        if lo > 0:
            im_ref[:, :lo, seg] = jnp.zeros((TB, lo, W), jnp.float32)
        im_ref[:, lo:hi, seg] = x_ref[:, lo + kh - PAD:hi + kh - PAD, :]
        if hi < H:
            im_ref[:, hi:, seg] = jnp.zeros((TB, H - hi, W), jnp.float32)

    # --- one MXU matmul: (TB*H, K*W) x (K*W, 2*NCp) ---------------------------------
    lhs = im_ref[...].reshape(TB * H, KW)
    r = jnp.dot(lhs, w_ref[...], preferred_element_type=jnp.float32)   # (TB*H, 2*NCp)

    # --- width max-pool (even vs odd conv columns), bias, ReLU ----------------------
    # max commutes with the per-channel bias add and ReLU is monotone, so this equals
    # maxpool(relu(conv + b)).  Both lane halves are 128-aligned -> clean vreg slices.
    rv_ref[...] = jnp.maximum(
        jnp.maximum(r[:, :NCp], r[:, NCp:]) + b_ref[...], 0.0)         # (TB*H, NCp)

    # --- height max-pool: adjacent row pairs via stride-2 sublane loads -------------
    even_rows = rv_ref[pl.ds(0, TB * Ho, stride=POOL), :]
    odd_rows = rv_ref[pl.ds(1, TB * Ho, stride=POOL), :]
    o_ref[...] = jnp.maximum(even_rows, odd_rows).reshape(TB, Ho, NCp)


def _im2row_weights(weight, W, NCp):
    """Combined im2row/Toeplitz weight of shape (K*W, 2*NCp).

    weight: (C_OUT, 1, K, K) PyTorch Conv2d weight.
      w[kh*W + j, p*NCp + c*Wo + wo] = weight[c, 0, kh, j - (POOL*wo + p) + PAD]
    zero where the tap falls outside the kernel (this also implements the conv's width
    zero-padding).  Columns [C_OUT*Wo, NCp) of each parity block are zero lane padding.
    """
    Wo = W // POOL
    NC = C_OUT * Wo
    wk = weight[:, 0, :, :].astype(jnp.float32)            # (C_OUT, K, K)
    j = jnp.arange(W)[:, None, None]                       # (W, 1, 1)
    wo = jnp.arange(Wo)[None, :, None]                     # (1, Wo, 1)
    p = jnp.arange(POOL)[None, None, :]                    # (1, 1, POOL)
    kw = j - (POOL * wo + p) + PAD                         # (W, Wo, POOL)
    valid = (kw >= 0) & (kw < K)
    kw_c = jnp.clip(kw, 0, K - 1)
    t = wk[:, :, kw_c]                                     # (C_OUT, K, W, Wo, POOL)
    t = jnp.where(valid[None, None], t, 0.0)
    t = jnp.transpose(t, (1, 2, 4, 0, 3))                  # (K, W, POOL, C_OUT, Wo)
    t = t.reshape(K, W, POOL, NC)
    if NCp > NC:
        t = jnp.pad(t, ((0, 0), (0, 0), (0, 0), (0, NCp - NC)))
    return t.reshape(K * W, POOL * NCp)


def _pick_batch_tile(B):
    """Batch images per grid step.

    Prefer exactly two equal grid steps when each step is still large (v7x: the two
    TensorCores get one step each via dimension_semantics=("parallel",)); otherwise
    take the largest divisor tile -- on v5e/v6e the grid is a serial loop, so a single
    big step minimizes the ~0.35 us per-step overhead.  VMEM stays well under the
    scoped limit up to TB=128 (few MiB of blocks + scratch).
    """
    if B % 2 == 0 and 16 <= B // 2 <= 128:
        return B // 2
    for tb in (128, 64, 32, 16, 8, 4, 2):
        if B % tb == 0:
            return tb
    return 1


def cnn_client_forward(x_nchw, weight, bias):
    """x_nchw: (B, 1, H, W) float32; weight: (16, 1, 5, 5); bias: (16,).
    Returns (B, 16, H//2, W//2) float32 (PyTorch NCHW)."""
    B, C_in, H, W = x_nchw.shape
    assert C_in == 1 and H % POOL == 0 and W % POOL == 0

    Ho, Wo = H // POOL, W // POOL
    NC = C_OUT * Wo
    NCp = ((NC + 127) // 128) * 128        # lane-dense (multiple-of-128) output columns
    TB = _pick_batch_tile(B)
    KW = K * W

    x = x_nchw[:, 0, :, :].astype(jnp.float32)               # (B, H, W); no pad copy
    w_cat = _im2row_weights(weight, W, NCp)                   # (K*W, 2*NCp)
    b_flat = jnp.repeat(bias.astype(jnp.float32), Wo)
    b_flat = jnp.pad(b_flat, (0, NCp - NC)).reshape(1, NCp)

    # Advisory cost hint so XLA schedules neighbouring ops around the custom call.
    flops = 2 * B * H * KW * (2 * NCp) + 4 * B * H * NCp
    bytes_accessed = 4 * (B * H * W + KW * 2 * NCp + NCp + B * Ho * NCp)

    out_flat = pl.pallas_call(
        conv_relu_pool_kernel,
        out_shape=jax.ShapeDtypeStruct((B, Ho, NCp), jnp.float32),
        grid=(B // TB,),
        in_specs=[
            pl.BlockSpec((TB, H, W), lambda b: (b, 0, 0)),
            pl.BlockSpec((KW, 2 * NCp), lambda b: (0, 0)),
            pl.BlockSpec((1, NCp), lambda b: (0, 0)),
        ],
        out_specs=pl.BlockSpec((TB, Ho, NCp), lambda b: (b, 0, 0)),
        scratch_shapes=[
            pltpu.VMEM((TB, H, KW), jnp.float32),     # im2row LHS
            pltpu.VMEM((TB * H, NCp), jnp.float32),   # width-pooled rows
        ],
        compiler_params=pltpu.CompilerParams(
            dimension_semantics=("parallel",)),
        cost_estimate=pl.CostEstimate(
            flops=flops, transcendentals=0, bytes_accessed=bytes_accessed),
    )(x, w_cat, b_flat)

    # Lane layout is (C_OUT, Wo) flattened (plus zero lane padding); untangle back to
    # PyTorch's NCHW convention.  (If the downstream consumer accepted the fused
    # (B, Ho, C_OUT*Wo) layout this transpose could be dropped entirely.)
    out = out_flat[:, :, :NC].reshape(B, Ho, C_OUT, Wo)
    return jnp.transpose(out, (0, 2, 1, 3))                   # (B, 16, Ho, Wo)


cnn_client_forward = jax.jit(cnn_client_forward)


def _reference_forward(x_nchw, weight, bias):
    """Pure-JAX reference matching PyTorch semantics (computed at highest precision)."""
    conv = jax.lax.conv_general_dilated(
        x_nchw.astype(jnp.float32), weight.astype(jnp.float32),
        window_strides=(1, 1),
        padding=((PAD, PAD), (PAD, PAD)),
        dimension_numbers=("NCHW", "OIHW", "NCHW"),
        precision=jax.lax.Precision.HIGHEST,
    ) + bias[None, :, None, None]
    relu = jnp.maximum(conv, 0.0)
    B, C, H, W = relu.shape
    return jnp.max(
        relu.reshape(B, C, H // POOL, POOL, W // POOL, POOL), axis=(3, 5)
    )


if __name__ == "__main__":
    key = jax.random.PRNGKey(0)
    kx, kw, kb = jax.random.split(key, 3)

    # Small MNIST-like input: batch=2, 1 channel, 16x16 spatial.
    x = jax.random.normal(kx, (2, 1, 16, 16), dtype=jnp.float32)

    # Deterministic synthetic parameters (PyTorch Conv2d shapes: (16, 1, 5, 5), (16,)).
    weight = 0.1 * jax.random.normal(kw, (C_OUT, 1, K, K), dtype=jnp.float32)
    bias = 0.1 * jax.random.normal(kb, (C_OUT,), dtype=jnp.float32)

    out = cnn_client_forward(x, weight, bias)
    out = jax.block_until_ready(out)

    ref = _reference_forward(x, weight, bias)
    assert out.shape == (2, C_OUT, 8, 8), out.shape
    assert jnp.allclose(out, ref, atol=5e-3, rtol=5e-3), float(jnp.max(jnp.abs(out - ref)))

    print("KERNEL_OK")
</pallas_src>

<mosaic_0001>
module attributes {stable_mosaic.version = 11 : i64} {
  func.func @conv_relu_pool_kernel(%arg0: i32, %arg1: memref<2x16x16xf32, #tpu.memory_space<vmem>>, %arg2: memref<80x256xf32, #tpu.memory_space<vmem>>, %arg3: memref<1x128xf32, #tpu.memory_space<vmem>>, %arg4: memref<2x8x128xf32, #tpu.memory_space<vmem>>, %arg5: memref<2x16x80xf32, #tpu.memory_space<vmem>>, %arg6: memref<32x128xf32, #tpu.memory_space<vmem>>) attributes {dimension_semantics = [#tpu.dimension_semantics<parallel>], iteration_bounds = array<i64: 1>, scalar_prefetch = 0 : i64, scratch_operands = 2 : i64, tpu.core_type = #tpu.core_type<tc>, window_params = [{transform_indices = @transform_0, window_bounds = array<i64: 2, 16, 16>}, {pipeline_mode = #tpu.pipeline_mode<synchronous>, transform_indices = @transform_1, window_bounds = array<i64: 80, 256>}, {pipeline_mode = #tpu.pipeline_mode<synchronous>, transform_indices = @transform_2, window_bounds = array<i64: 1, 128>}, {transform_indices = @transform_3, window_bounds = array<i64: 2, 8, 128>}]} {
    %cst = arith.constant 0.000000e+00 : f32
    %0 = vector.broadcast %cst : f32 to vector<2x2x16xf32>
    %c0 = arith.constant 0 : index
    %c0_0 = arith.constant 0 : index
    %c0_1 = arith.constant 0 : index
    %1 = vector.load %arg5[%c0, %c0_0, %c0_1] : memref<2x16x80xf32, #tpu.memory_space<vmem>>, vector<2x2x16xf32>
    tpu.vector_store %arg5[%c0, %c0_0, %c0_1], %0 {strides = array<i32>} : memref<2x16x80xf32, #tpu.memory_space<vmem>>, vector<2x2x16xf32>,
    %c0_2 = arith.constant 0 : index
    %c0_3 = arith.constant 0 : index
    %c0_4 = arith.constant 0 : index
    %2 = vector.load %arg1[%c0_2, %c0_3, %c0_4] : memref<2x16x16xf32, #tpu.memory_space<vmem>>, vector<2x14x16xf32>
    %c0_5 = arith.constant 0 : index
    %c2 = arith.constant 2 : index
    %c0_6 = arith.constant 0 : index
    %3 = vector.load %arg5[%c0_5, %c2, %c0_6] : memref<2x16x80xf32, #tpu.memory_space<vmem>>, vector<2x14x16xf32>
    tpu.vector_store %arg5[%c0_5, %c2, %c0_6], %2 {strides = array<i32>} : memref<2x16x80xf32, #tpu.memory_space<vmem>>, vector<2x14x16xf32>,
    %cst_7 = arith.constant 0.000000e+00 : f32
    %4 = vector.broadcast %cst_7 : f32 to vector<2x1x16xf32>
    %c0_8 = arith.constant 0 : index
    %c0_9 = arith.constant 0 : index
    %c16 = arith.constant 16 : index
    %5 = vector.load %arg5[%c0_8, %c0_9, %c16] : memref<2x16x80xf32, #tpu.memory_space<vmem>>, vector<2x1x16xf32>
    tpu.vector_store %arg5[%c0_8, %c0_9, %c16], %4 {strides = array<i32>} : memref<2x16x80xf32, #tpu.memory_space<vmem>>, vector<2x1x16xf32>,
    %c0_10 = arith.constant 0 : index
    %c0_11 = arith.constant 0 : index
    %c0_12 = arith.constant 0 : index
    %6 = vector.load %arg1[%c0_10, %c0_11, %c0_12] : memref<2x16x16xf32, #tpu.memory_space<vmem>>, vector<2x15x16xf32>
    %c0_13 = arith.constant 0 : index
    %c1 = arith.constant 1 : index
    %c16_14 = arith.constant 16 : index
    %7 = vector.load %arg5[%c0_13, %c1, %c16_14] : memref<2x16x80xf32, #tpu.memory_space<vmem>>, vector<2x15x16xf32>
    tpu.vector_store %arg5[%c0_13, %c1, %c16_14], %6 {strides = array<i32>} : memref<2x16x80xf32, #tpu.memory_space<vmem>>, vector<2x15x16xf32>,
    %c0_15 = arith.constant 0 : index
    %c0_16 = arith.constant 0 : index
    %c0_17 = arith.constant 0 : index
    %8 = vector.load %arg1[%c0_15, %c0_16, %c0_17] : memref<2x16x16xf32, #tpu.memory_space<vmem>>, vector<2x16x16xf32>
    %c0_18 = arith.constant 0 : index
    %c0_19 = arith.constant 0 : index
    %c32 = arith.constant 32 : index
    %9 = vector.load %arg5[%c0_18, %c0_19, %c32] : memref<2x16x80xf32, #tpu.memory_space<vmem>>, vector<2x16x16xf32>
    tpu.vector_store %arg5[%c0_18, %c0_19, %c32], %8 {strides = array<i32>} : memref<2x16x80xf32, #tpu.memory_space<vmem>>, vector<2x16x16xf32>,
    %c0_20 = arith.constant 0 : index
    %c1_21 = arith.constant 1 : index
    %c0_22 = arith.constant 0 : index
    %10 = vector.load %arg1[%c0_20, %c1_21, %c0_22] : memref<2x16x16xf32, #tpu.memory_space<vmem>>, vector<2x15x16xf32>
    %c0_23 = arith.constant 0 : index
    %c0_24 = arith.constant 0 : index
    %c48 = arith.constant 48 : index
    %11 = vector.load %arg5[%c0_23, %c0_24, %c48] : memref<2x16x80xf32, #tpu.memory_space<vmem>>, vector<2x15x16xf32>
    tpu.vector_store %arg5[%c0_23, %c0_24, %c48], %10 {strides = array<i32>} : memref<2x16x80xf32, #tpu.memory_space<vmem>>, vector<2x15x16xf32>,
    %cst_25 = arith.constant 0.000000e+00 : f32
    %12 = vector.broadcast %cst_25 : f32 to vector<2x1x16xf32>
    %c0_26 = arith.constant 0 : index
    %c15 = arith.constant 15 : index
    %c48_27 = arith.constant 48 : index
    %13 = vector.load %arg5[%c0_26, %c15, %c48_27] : memref<2x16x80xf32, #tpu.memory_space<vmem>>, vector<2x1x16xf32>
    tpu.vector_store %arg5[%c0_26, %c15, %c48_27], %12 {strides = array<i32>} : memref<2x16x80xf32, #tpu.memory_space<vmem>>, vector<2x1x16xf32>,
    %c0_28 = arith.constant 0 : index
    %c2_29 = arith.constant 2 : index
    %c0_30 = arith.constant 0 : index
    %14 = vector.load %arg1[%c0_28, %c2_29, %c0_30] : memref<2x16x16xf32, #tpu.memory_space<vmem>>, vector<2x14x16xf32>
    %c0_31 = arith.constant 0 : index
    %c0_32 = arith.constant 0 : index
    %c64 = arith.constant 64 : index
    %15 = vector.load %arg5[%c0_31, %c0_32, %c64] : memref<2x16x80xf32, #tpu.memory_space<vmem>>, vector<2x14x16xf32>
    tpu.vector_store %arg5[%c0_31, %c0_32, %c64], %14 {strides = array<i32>} : memref<2x16x80xf32, #tpu.memory_space<vmem>>, vector<2x14x16xf32>,
    %cst_33 = arith.constant 0.000000e+00 : f32
    %16 = vector.broadcast %cst_33 : f32 to vector<2x2x16xf32>
    %c0_34 = arith.constant 0 : index
    %c14 = arith.constant 14 : index
    %c64_35 = arith.constant 64 : index
    %17 = vector.load %arg5[%c0_34, %c14, %c64_35] : memref<2x16x80xf32, #tpu.memory_space<vmem>>, vector<2x2x16xf32>
    tpu.vector_store %arg5[%c0_34, %c14, %c64_35], %16 {strides = array<i32>} : memref<2x16x80xf32, #tpu.memory_space<vmem>>, vector<2x2x16xf32>,
    %c0_36 = arith.constant 0 : index
    %c0_37 = arith.constant 0 : index
    %c0_38 = arith.constant 0 : index
    %18 = vector.load %arg5[%c0_36, %c0_37, %c0_38] : memref<2x16x80xf32, #tpu.memory_space<vmem>>, vector<2x16x80xf32>
    %19 = vector.shape_cast %18 : vector<2x16x80xf32> to vector<32x80xf32>
    %c0_39 = arith.constant 0 : index
    %c0_40 = arith.constant 0 : index
    %20 = vector.load %arg2[%c0_39, %c0_40] : memref<80x256xf32, #tpu.memory_space<vmem>>, vector<80x256xf32>
    %cst_41 = arith.constant dense<0.000000e+00> : vector<32x256xf32>
    %21 = tpu.matmul %19, %20, %cst_41 {dimension_numbers = #tpu.dot_dimension_numbers<[1], [0], [0], [1], [0, 0, 1, 1], [], []>} : vector<32x80xf32>, vector<80x256xf32>, vector<32x256xf32> -> vector<32x256xf32>
    %22 = vector.extract_strided_slice %21 {offsets = [0, 0], sizes = [32, 128], strides = [1, 1]} : vector<32x256xf32> to vector<32x128xf32>
    %23 = vector.extract_strided_slice %21 {offsets = [0, 128], sizes = [32, 128], strides = [1, 1]} : vector<32x256xf32> to vector<32x128xf32>
    %24 = arith.maximumf %22, %23 : vector<32x128xf32>
    %c0_42 = arith.constant 0 : index
    %c0_43 = arith.constant 0 : index
    %25 = vector.load %arg3[%c0_42, %c0_43] : memref<1x128xf32, #tpu.memory_space<vmem>>, vector<1x128xf32>
    %26 = vector.broadcast %25 : vector<1x128xf32> to vector<32x128xf32>
    %27 = arith.addf %24, %26 : vector<32x128xf32>
    %cst_44 = arith.constant 0.000000e+00 : f32
    %28 = vector.broadcast %cst_44 : f32 to vector<32x128xf32>
    %29 = arith.maximumf %27, %28 : vector<32x128xf32>
    %c0_45 = arith.constant 0 : index
    %c0_46 = arith.constant 0 : index
    %30 = vector.load %arg6[%c0_45, %c0_46] : memref<32x128xf32, #tpu.memory_space<vmem>>, vector<32x128xf32>
    tpu.vector_store %arg6[%c0_45, %c0_46], %29 {strides = array<i32>} : memref<32x128xf32, #tpu.memory_space<vmem>>, vector<32x128xf32>,
    %c0_47 = arith.constant 0 : index
    %c0_48 = arith.constant 0 : index
    %31 = tpu.strided_load %arg6[%c0_47, %c0_48] {strides = array<i32: 2, 1>} : memref<32x128xf32, #tpu.memory_space<vmem>>, vector<16x128xf32>
    %c1_49 = arith.constant 1 : index
    %c0_50 = arith.constant 0 : index
    %32 = tpu.strided_load %arg6[%c1_49, %c0_50] {strides = array<i32: 2, 1>} : memref<32x128xf32, #tpu.memory_space<vmem>>, vector<16x128xf32>
    %33 = arith.maximumf %31, %32 : vector<16x128xf32>
    %34 = vector.shape_cast %33 : vector<16x128xf32> to vector<2x8x128xf32>
    %c0_51 = arith.constant 0 : index
    %c0_52 = arith.constant 0 : index
    %c0_53 = arith.constant 0 : index
    %35 = vector.load %arg4[%c0_51, %c0_52, %c0_53] : memref<2x8x128xf32, #tpu.memory_space<vmem>>, vector<2x8x128xf32>
    tpu.vector_store %arg4[%c0_51, %c0_52, %c0_53], %34 {strides = array<i32>} : memref<2x8x128xf32, #tpu.memory_space<vmem>>, vector<2x8x128xf32>,
    return
  }
  func.func @transform_0(%arg0: i32) -> (i32, i32, i32) {
    %c0_i32 = arith.constant 0 : i32
    %c0_i32_0 = arith.constant 0 : i32
    %c0_i32_1 = arith.constant 0 : i32
    return %arg0, %c0_i32, %c0_i32_0 : i32, i32, i32
  }
  func.func @transform_1(%arg0: i32) -> (i32, i32) {
    %c0_i32 = arith.constant 0 : i32
    %c0_i32_0 = arith.constant 0 : i32
    %c0_i32_1 = arith.constant 0 : i32
    return %c0_i32, %c0_i32_0 : i32, i32
  }
  func.func @transform_2(%arg0: i32) -> (i32, i32) {
    %c0_i32 = arith.constant 0 : i32
    %c0_i32_0 = arith.constant 0 : i32
    %c0_i32_1 = arith.constant 0 : i32
    return %c0_i32, %c0_i32_0 : i32, i32
  }
  func.func @transform_3(%arg0: i32) -> (i32, i32, i32) {
    %c0_i32 = arith.constant 0 : i32
    %c0_i32_0 = arith.constant 0 : i32
    %c0_i32_1 = arith.constant 0 : i32
    return %arg0, %c0_i32, %c0_i32_0 : i32, i32, i32
  }
}

</mosaic_0001>

<llo_original>
// kernel: cnn_client_forward.1
$region0: #{cnn_client_forward.1}
  #allocation0 [shape = 'u32[]', space=smem, size = 0x4, offset = 0x4, fixed_abs, tag = 'smem constant byte address 0x4 - core index']
  #allocation1 [shape = 'u32[144,128]{1,0:T(1,128)}', space=vmem, size = 0x12000, scoped, tag = 'internal scratch']
  #allocation2 [shape = 'f32[2,16,80]{2,1,0:T(8,128)}', space=vmem, size = 0x4000, scoped, tag = 'scratch operand']
  #allocation3 [shape = 'f32[32,128]{1,0:T(8,128)}', space=vmem, size = 0x4000, scoped, tag = 'scratch operand']
  %s0 = inlined_call_operand.vmem [shape: f32[2,16,16], index: 0, kind: input, shape index: {}]
  %s1 = inlined_call_operand.vmem [shape: f32[80,256], index: 1, kind: input, shape index: {}]
  %s2 = inlined_call_operand.vmem [shape: f32[1,128], index: 2, kind: input, shape index: {}]
  %s3 = inlined_call_operand.vmem [shape: f32[2,8,128], index: 3, kind: output, shape index: {}]
  %s4 = sld [smem:[#allocation0]]
  $region22: #{cnn_client_forward.1} parent=0
    _
  %s6 = ssub.s32 1, %s4
  %s7 = scalar_select 0, %s6, %s4
  // Predicated region
  $region2: #{cnn_client_forward.1} parent=0 // pred_check
    _
  $region3: #{cnn_client_forward.1} parent=0 // pred_check_branch
    %9 = sbr.rel (0) target = $region5
  $region4: #{cnn_client_forward.1} parent=0 // pred_region
    _
  $region5: #{cnn_client_forward.1} parent=0 // pred_fallthru
    _
  // Predicated region
  $region6: #{cnn_client_forward.1} parent=0 // pred_check
    _
  $region7: #{cnn_client_forward.1} parent=0 // pred_check_branch
    %11 = sbr.rel (0) target = $region9
  $region8: #{cnn_client_forward.1} parent=0 // pred_region
    _
  $region9: #{cnn_client_forward.1} parent=0 // pred_fallthru
    _
  // Predicated region
  $region10: #{cnn_client_forward.1} parent=0 // pred_check
    _
  $region11: #{cnn_client_forward.1} parent=0 // pred_check_branch
    %13 = sbr.rel (0) target = $region13
  $region12: #{cnn_client_forward.1} parent=0 // pred_region
    _
  $region13: #{cnn_client_forward.1} parent=0 // pred_fallthru
    _
  %vm14 = vcmask 123904
  %15 = vst.msk [vmem:[#allocation2] sm:$0x3] %vm14, 0.0
  %16 = vst.msk [vmem:[#allocation2 + $0x10] sm:$0x3] %vm14, 0.0
  %v17 = vld [vmem:[%s0] sm:$0xff]
  %v18 = vld [vmem:[%s0 + $0x8] sm:$0x3f]
  %v19 = vld [vmem:[%s0 + $0x10] sm:$0xff]
  %v20 = vld [vmem:[%s0 + $0x18] sm:$0x3f]
  %vm21 = vcmask 130048
  %22 = vst.msk [vmem:[#allocation2 + $0x2] sm:$0xff] %vm21, %v17
  %vm23 = vcmask 128000
  %24 = vst.msk [vmem:[#allocation2 + $0xa] sm:$0x3f] %vm23, %v18
  %25 = vst.msk [vmem:[#allocation2 + $0x12] sm:$0xff] %vm21, %v19
  %26 = vst.msk [vmem:[#allocation2 + $0x1a] sm:$0x3f] %vm23, %v20
  %vm27 = vcmask 254080
  %28 = vst.msk [vmem:[#allocation2] sm:$0x1] %vm27, 0.0
  %29 = vst.msk [vmem:[#allocation2 + $0x10] sm:$0x1] %vm27, 0.0
  %v30 = vld [vmem:[%s0] sm:$0xff]
  %v31 = vld [vmem:[%s0 + $0x8] sm:$0x7f]
  %v32 = vld [vmem:[%s0 + $0x10] sm:$0xff]
  %v33 = vld [vmem:[%s0 + $0x18] sm:$0x7f]
  %38 = vrot.lane.b32.xlu0 %v30, 16
  %v39 = vpop.permute.xlu0 %38
  %40 = vrot.lane.b32.xlu0 %v31, 16
  %v41 = vpop.permute.xlu0 %40
  %42 = vrot.lane.b32.xlu0 %v32, 16
  %v43 = vpop.permute.xlu0 %42
  %44 = vrot.lane.b32.xlu0 %v33, 16
  %v45 = vpop.permute.xlu0 %44
  %vm50 = vcmask 261248
  %51 = vst.msk [vmem:[#allocation2 + $0x1] sm:$0xff] %vm50, %v39
  %vm52 = vcmask 260224
  %53 = vst.msk [vmem:[#allocation2 + $0x9] sm:$0x7f] %vm52, %v41
  %54 = vst.msk [vmem:[#allocation2 + $0x11] sm:$0xff] %vm50, %v43
  %55 = vst.msk [vmem:[#allocation2 + $0x19] sm:$0x7f] %vm52, %v45
  %v56 = vld [vmem:[%s0] sm:$0xff]
  %v57 = vld [vmem:[%s0 + $0x8] sm:$0xff]
  %v58 = vld [vmem:[%s0 + $0x10] sm:$0xff]
  %v59 = vld [vmem:[%s0 + $0x18] sm:$0xff]
  %64 = vrot.lane.b32.xlu0 %v56, 32
  %v65 = vpop.permute.xlu0 %64
  %66 = vrot.lane.b32.xlu0 %v57, 32
  %v67 = vpop.permute.xlu0 %66
  %68 = vrot.lane.b32.xlu0 %v58, 32
  %v69 = vpop.permute.xlu0 %68
  %70 = vrot.lane.b32.xlu0 %v59, 32
  %v71 = vpop.permute.xlu0 %70
  %vm76 = vcmask 392448
  %77 = vst.msk [vmem:[#allocation2] sm:$0xff] %vm76, %v65
  %78 = vst.msk [vmem:[#allocation2 + $0x8] sm:$0xff] %vm76, %v67
  %79 = vst.msk [vmem:[#allocation2 + $0x10] sm:$0xff] %vm76, %v69
  %80 = vst.msk [vmem:[#allocation2 + $0x18] sm:$0xff] %vm76, %v71
  %v81 = vld [vmem:[%s0 + $0x1] sm:$0xff]
  %v82 = vld [vmem:[%s0 + $0x9] sm:$0x7f]
  %v83 = vld [vmem:[%s0 + $0x11] sm:$0xff]
  %v84 = vld [vmem:[%s0 + $0x19] sm:$0x7f]
  %89 = vrot.lane.b32.xlu0 %v81, 48
  %v90 = vpop.permute.xlu0 %89
  %91 = vrot.lane.b32.xlu0 %v82, 48
  %v92 = vpop.permute.xlu0 %91
  %93 = vrot.lane.b32.xlu0 %v83, 48
  %v94 = vpop.permute.xlu0 %93
  %95 = vrot.lane.b32.xlu0 %v84, 48
  %v96 = vpop.permute.xlu0 %95
  %vm101 = vcmask 523648
  %102 = vst.msk [vmem:[#allocation2] sm:$0xff] %vm101, %v90
  %vm103 = vcmask 522624
  %104 = vst.msk [vmem:[#allocation2 + $0x8] sm:$0x7f] %vm103, %v92
  %105 = vst.msk [vmem:[#allocation2 + $0x10] sm:$0xff] %vm101, %v94
  %106 = vst.msk [vmem:[#allocation2 + $0x18] sm:$0x7f] %vm103, %v96
  %vm107 = vcmask 516480
  %108 = vst.msk [vmem:[#allocation2 + $0xf] sm:$0x1] %vm107, 0.0
  %109 = vst.msk [vmem:[#allocation2 + $0x1f] sm:$0x1] %vm107, 0.0
  %v110 = vld [vmem:[%s0 + $0x2] sm:$0xff]
  %v111 = vld [vmem:[%s0 + $0xa] sm:$0x3f]
  %v112 = vld [vmem:[%s0 + $0x12] sm:$0xff]
  %v113 = vld [vmem:[%s0 + $0x1a] sm:$0x3f]
  %118 = vrot.lane.b32.xlu0 %v110, 64
  %v119 = vpop.permute.xlu0 %118
  %120 = vrot.lane.b32.xlu0 %v111, 64
  %v121 = vpop.permute.xlu0 %120
  %122 = vrot.lane.b32.xlu0 %v112, 64
  %v123 = vpop.permute.xlu0 %122
  %124 = vrot.lane.b32.xlu0 %v113, 64
  %v125 = vpop.permute.xlu0 %124
  %vm130 = vcmask 654848
  %131 = vst.msk [vmem:[#allocation2] sm:$0xff] %vm130, %v119
  %vm132 = vcmask 652800
  %133 = vst.msk [vmem:[#allocation2 + $0x8] sm:$0x3f] %vm132, %v121
  %134 = vst.msk [vmem:[#allocation2 + $0x10] sm:$0xff] %vm130, %v123
  %135 = vst.msk [vmem:[#allocation2 + $0x18] sm:$0x3f] %vm132, %v125
  %vm136 = vcmask 648704
  %137 = vst.msk [vmem:[#allocation2 + $0xe] sm:$0x3] %vm136, 0.0
  %138 = vst.msk [vmem:[#allocation2 + $0x1e] sm:$0x3] %vm136, 0.0
  %v139 = vld [vmem:[#allocation2] sm:$0xff]
  %v140 = vld [vmem:[#allocation2 + $0x8] sm:$0xff]
  %v141 = vld [vmem:[#allocation2 + $0x10] sm:$0xff]
  %v142 = vld [vmem:[#allocation2 + $0x18] sm:$0xff]
  %v143 = vld [vmem:[%s1] sm:$0xff]
  %v144 = vld [vmem:[%s1 + $0x8] sm:$0xff]
  %v145 = vld [vmem:[%s1 + $0x10] sm:$0xff]
  %v146 = vld [vmem:[%s1 + $0x18] sm:$0xff]
  %v147 = vld [vmem:[%s1 + $0x20] sm:$0xff]
  %v148 = vld [vmem:[%s1 + $0x28] sm:$0xff]
  %v149 = vld [vmem:[%s1 + $0x30] sm:$0xff]
  %v150 = vld [vmem:[%s1 + $0x38] sm:$0xff]
  %v151 = vld [vmem:[%s1 + $0x40] sm:$0xff]
  %v152 = vld [vmem:[%s1 + $0x48] sm:$0xff]
  %v153 = vld [vmem:[%s1 + $0x50] sm:$0xff]
  %v154 = vld [vmem:[%s1 + $0x58] sm:$0xff]
  %v155 = vld [vmem:[%s1 + $0x60] sm:$0xff]
  %v156 = vld [vmem:[%s1 + $0x68] sm:$0xff]
  %v157 = vld [vmem:[%s1 + $0x70] sm:$0xff]
  %v158 = vld [vmem:[%s1 + $0x78] sm:$0xff]
  %v159 = vld [vmem:[%s1 + $0x80] sm:$0xff]
  %v160 = vld [vmem:[%s1 + $0x88] sm:$0xff]
  %v161 = vld [vmem:[%s1 + $0x90] sm:$0xff]
  %v162 = vld [vmem:[%s1 + $0x98] sm:$0xff]
  %vm163 = vcmask 654336
  %v165 = vsel %vm163, %v139, 0
  %v168 = vsel %vm163, %v140, 0
  %v171 = vsel %vm163, %v141, 0
  %v174 = vsel %vm163, %v142, 0
  %176 = vmatprep.subr.mxu0 %v144
  %177 = vmatpush1.msra.mxu0 %v143
  %178 = vmatprep.subr.mxu0 %v146
  %179 = vmatpush1.msra.mxu0 %v145
  %180 = vmatprep.subr.mxu0 %v148
  %181 = vmatpush1.msra.mxu0 %v147
  %182 = vmatprep.subr.mxu0 %v150
  %183 = vmatpush1.msra.mxu0 %v149
  %184 = vmatprep.subr.mxu0 %v152
  %185 = vmatpush1.msra.mxu0 %v151
  %186 = vmatprep.subr.mxu0 %v154
  %187 = vmatpush1.msra.mxu0 %v153
  %188 = vmatprep.subr.mxu0 %v156
  %189 = vmatpush1.msra.mxu0 %v155
  %190 = vmatprep.subr.mxu0 %v158
  %191 = vmatpush1.msra.mxu0 %v157
  %192 = vmatprep.subr.mxu0 %v160
  %193 = vmatpush1.msra.mxu0 %v159
  %194 = vmatprep.subr.mxu0 %v162
  %195 = vmatpush1.msra.mxu0 %v161
  %196 = vmatprep.subr.mxu0 0.0
  %197 = vmatpush1.msra.mxu0 0.0
  %198 = vmatprep.subr.mxu0 0.0
  %199 = vmatpush1.msra.mxu0 0.0
  %200 = vmatprep.subr.mxu0 0.0
  %201 = vmatpush1.msra.mxu0 0.0
  %202 = vmatprep.subr.mxu0 0.0
  %203 = vmatpush1.msra.mxu0 0.0
  %204 = vmatprep.subr.mxu0 0.0
  %205 = vmatpush1.msra.mxu0 0.0
  %206 = vmatprep.subr.mxu0 0.0
  %207 = vmatpush1.msra.mxu0 0.0
  %208 = vmatprep.subr.mxu0 0.0
  %209 = vmatpush1.msra.mxu0 0.0
  %210 = vmatprep.subr.mxu0 0.0
  %211 = vmatpush1.msra.mxu0 0.0
  %212 = vmatprep.subr.mxu0 0.0
  %213 = vmatpush1.msra.mxu0 0.0
  %214 = vmatprep.subr.mxu0 0.0
  %215 = vmatpush1.msra.mxu0 0.0
  %216 = vmatprep.subr.mxu0 0.0
  %217 = vmatpush1.msra.mxu0 0.0
  %218 = vmatprep.subr.mxu0 0.0
  %219 = vmatpush1.msra.mxu0 0.0
  %220 = vmatprep.subr.mxu0 0.0
  %221 = vmatpush1.msra.mxu0 0.0
  %222 = vmatprep.subr.mxu0 0.0
  %223 = vmatpush1.msra.mxu0 0.0
  %224 = vmatprep.subr.mxu0 0.0
  %225 = vmatpush1.msra.mxu0 0.0
  %226 = vmatprep.subr.mxu0 0.0
  %227 = vmatpush1.msra.mxu0 0.0
  %228 = vmatprep.subr.mxu0 0.0
  %229 = vmatpush1.msra.mxu0 0.0
  %230 = vmatprep.subr.mxu0 0.0
  %231 = vmatpush1.msra.mxu0 0.0
  %232 = vmatprep.subr.mxu0 0.0
  %233 = vmatpush1.msra.mxu0 0.0
  %234 = vmatprep.subr.mxu0 0.0
  %235 = vmatpush1.msra.mxu0 0.0
  %236 = vmatprep.subr.mxu0 0.0
  %237 = vmatpush1.msra.mxu0 0.0
  %238 = vmatprep.subr.mxu0 0.0
  %239 = vmatpush1.msra.mxu0 0.0
  %240 = vmatprep.mubr.f32.mxu0 0.0
  %241 = vmatmul.mubr.f32.gmra.mrb[0].mxu0 %v165
  %v242 = vpop.f32.mrb[0].mxu0
  %v243 = vadd.f32 0.0, %v242
  %v244 = vpop.f32.mrb[0].mxu0
  %v245 = vadd.f32 0.0, %v244
  %246 = vmatprep.mubr.f32.mxu0 0.0
  %247 = vmatmul.mubr.f32.gmra.mrb[0].mxu0 %v168
  %v248 = vpop.f32.mrb[0].mxu0
  %v249 = vadd.f32 0.0, %v248
  %v250 = vpop.f32.mrb[0].mxu0
  %v251 = vadd.f32 0.0, %v250
  %252 = vmatprep.mubr.f32.mxu0 0.0
  %253 = vmatmul.mubr.f32.gmra.mrb[0].mxu0 %v171
  %v254 = vpop.f32.mrb[0].mxu0
  %v255 = vadd.f32 0.0, %v254
  %v256 = vpop.f32.mrb[0].mxu0
  %v257 = vadd.f32 0.0, %v256
  %258 = vmatprep.mubr.f32.mxu0 0.0
  %259 = vmatmul.mubr.f32.gmra.mrb[0].mxu0 %v174
  %v260 = vpop.f32.mrb[0].mxu0
  %v261 = vadd.f32 0.0, %v260
  %v262 = vpop.f32.mrb[0].mxu0
  %v263 = vadd.f32 0.0, %v262
  %264 = vdwg.mxu0
  %v265 = vmax.f32 %v243, %v245
  %v266 = vmax.f32 %v249, %v251
  %v267 = vmax.f32 %v255, %v257
  %v268 = vmax.f32 %v261, %v263
  %v269 = vld [vmem:[%s2] sm:$0x1]
  %v271 = vlaneseq
  %v272 = vshrl.u32 %v271, 7
  %v273 = vsub.s32 0, %v272
  %v274 = vrot.slane %v269, %v273
  %v276 = vadd.f32 %v265, %v274
  %v277 = vadd.f32 %v266, %v274
  %v278 = vadd.f32 %v267, %v274
  %v279 = vadd.f32 %v268, %v274
  %v280 = vmax.f32 %v276, 0.0
  %v281 = vmax.f32 %v277, 0.0
  %v282 = vmax.f32 %v278, 0.0
  %v283 = vmax.f32 %v279, 0.0
  %284 = vst [vmem:[#allocation3] sm:$0xff] %v280
  %285 = vst [vmem:[#allocation3 + $0x8] sm:$0xff] %v281
  %286 = vst [vmem:[#allocation3 + $0x10] sm:$0xff] %v282
  %287 = vst [vmem:[#allocation3 + $0x18] sm:$0xff] %v283
  %v288 = vld [vmem:[#allocation3] ss:$2 sm:$0xff]
  %s289 = scalar_lea.vmem [#allocation3], 16
  %v290 = vld [vmem:[%s289] ss:$2 sm:$0xff]
  %s291 = scalar_lea.vmem [#allocation3], 1
  %v292 = vld [vmem:[%s291] ss:$2 sm:$0xff]
  %s293 = scalar_lea.vmem [#allocation3], 17
  %v294 = vld [vmem:[%s293] ss:$2 sm:$0xff]
  %v295 = vmax.f32 %v288, %v292
  %v296 = vmax.f32 %v290, %v294
  %297 = vst [vmem:[%s3] sm:$0xff] %v295
  %298 = vst [vmem:[%s3 + $0x8] sm:$0xff] %v296
  // Predicated region
  $region14: #{cnn_client_forward.1} parent=0 // pred_check
    _
  $region15: #{cnn_client_forward.1} parent=0 // pred_check_branch
    %300 = sbr.rel (0) target = $region17
  $region16: #{cnn_client_forward.1} parent=0 // pred_region
    _
  $region17: #{cnn_client_forward.1} parent=0 // pred_fallthru
    _
  // Predicated region
  $region18: #{cnn_client_forward.1} parent=0 // pred_check
    _
  $region19: #{cnn_client_forward.1} parent=0 // pred_check_branch
    %302 = sbr.rel (0) target = $region21
  $region20: #{cnn_client_forward.1} parent=0 // pred_region
    _
  $region21: #{cnn_client_forward.1} parent=0 // pred_fallthru
    _

</llo_original>
